<compile_context>
chip_gen: v7x
topology: tpu7x:2x2x1
jax: 0.10.0
libtpu: 0.0.40
codegen_flags: <defaults>
</compile_context>

<pallas_src>
import functools

import jax
import jax.numpy as jnp
from jax.experimental import pallas as pl
from jax.experimental.pallas import tpu as pltpu

_VMEM_LIMIT = 32 * 1024 * 1024    # scoped-VMEM limit requested from Mosaic (safe on v5e/v6e/v7x)
_VMEM_BUDGET = 20 * 1024 * 1024   # target for the tile chooser (headroom for compiler scratch)
_DENSE_CLASS_MAX = 16             # unrolled dense-vreg path for small class counts


def _const_pow(base, gamma):
    """base ** gamma for a *static* gamma, avoiding the exp/log EUP round-trip."""
    if gamma == 0.0:
        return jnp.ones_like(base)
    if gamma == 1.0:
        return base
    if float(gamma).is_integer() and 1.0 < gamma <= 16.0:
        g = int(gamma)
        result, acc = None, base
        while g:                      # exponentiation by squaring (VALU only)
            if g & 1:
                result = acc if result is None else result * acc
            g >>= 1
            if g:
                acc = acc * acc
        return result
    if gamma == 0.5:
        return jnp.sqrt(base)
    # TODO(synk): arbitrary fractional gamma still needs pow (exp+log on the EUP).
    return jnp.power(base, jnp.float32(gamma))


def _asl_kernel_dense(x_ref, t_ref, out_ref, *, gamma, eps, num_classes,
                      total_rows, sub, n_j, has_tail):
    """Small-C path: spatial fills dense (sub, 128) vregs; classes unrolled."""
    p = pl.program_id(1)
    j = pl.program_id(2)

    @pl.when(j == 0)
    def _():
        out_ref[...] = jnp.zeros_like(out_ref)

    tgt = t_ref[0, 0]                                        # (sub, 128) int32
    xc = [x_ref[0, ci].astype(jnp.float32) for ci in range(num_classes)]

    # class-wise max: chain of vreg-wise maxima (no XLU sublane reduce)
    m = xc[0]
    for ci in range(1, num_classes):
        m = jnp.maximum(m, xc[ci])

    # single exp per element; softmax denominator
    es = [jnp.exp(v - m) for v in xc]
    sum_e = es[0]
    for ci in range(1, num_classes):
        sum_e = sum_e + es[ci]
    shift = m + jnp.log(sum_e)                               # log-softmax offset
    inv_sum = 1.0 / sum_e

    # focal weight + smoothed cross-entropy via selects and two partial sums
    sum_all = None
    sum_tgt = None
    for ci in range(num_classes):
        lp = xc[ci] - shift                                  # log p_ci
        prob = es[ci] * inv_sum
        is_t = tgt == ci
        base = jnp.where(is_t, 1.0 - prob, prob)             # (1-p) target, p otherwise
        lpw = lp * _const_pow(base, gamma)
        sum_all = lpw if sum_all is None else sum_all + lpw
        hit = jnp.where(is_t, lpw, 0.0)
        sum_tgt = hit if sum_tgt is None else sum_tgt + hit

    loss = -((eps / num_classes) * sum_all + (1.0 - eps) * sum_tgt)   # (sub, 128)

    if has_tail:
        row = jax.lax.broadcasted_iota(jnp.int32, (sub, 128), 0)
        g = p * n_j + j
        loss = jnp.where(g * sub + row < total_rows, loss, 0.0)

    out_ref[...] += loss[None, None]                         # (1, 1, sub, 128)


def _asl_kernel_lanes(x_ref, t_ref, out_ref, *, gamma, eps, num_classes,
                      valid_s, tile_s, has_tail):
    """General path: classes on sublanes, spatial on lanes."""
    j = pl.program_id(1)

    @pl.when(j == 0)
    def _():
        out_ref[...] = jnp.zeros_like(out_ref)

    x = x_ref[0].astype(jnp.float32)                         # (C, tile_s)
    tgt = t_ref[0]                                           # (1, tile_s) int32

    m = jnp.max(x, axis=0, keepdims=True)
    z = x - m
    e = jnp.exp(z)                                           # single exp per element
    sum_e = jnp.sum(e, axis=0, keepdims=True)
    log_preds = z - jnp.log(sum_e)
    xs = e / sum_e

    cls = jax.lax.broadcasted_iota(jnp.int32, (num_classes, tile_s), 0)
    is_t = cls == tgt
    base = jnp.where(is_t, 1.0 - xs, xs)
    lpw = log_preds * _const_pow(base, gamma)

    sum_all = jnp.sum(lpw, axis=0, keepdims=True)
    sum_tgt = jnp.sum(jnp.where(is_t, lpw, 0.0), axis=0, keepdims=True)
    loss = -((eps / num_classes) * sum_all + (1.0 - eps) * sum_tgt)   # (1, tile_s)

    if has_tail:
        lane = jax.lax.broadcasted_iota(jnp.int32, (1, tile_s), 1)
        loss = jnp.where(j * tile_s + lane < valid_s, loss, 0.0)

    out_ref[...] += loss[None]                               # (1, 1, tile_s)


def _pick_sub_rows(r, c, in_item, max_rows):
    """Rows of 128 lanes per dense block (multiple of 8, or == r when r <= 8)."""
    if r <= 8:
        return r

    def footprint(sub):
        lanes = sub * 128
        return (2 * c * lanes * in_item          # logits, double-buffered
                + 2 * lanes * 4                  # int32 targets, double-buffered
                + 2 * lanes * 4                  # resident f32 accumulator block
                + (2 * c + 8) * lanes * 4)       # live f32 intermediates

    sub = min(max_rows, (r // 8) * 8)
    sub = max(8, (sub // 8) * 8)
    while sub > 8 and footprint(sub) > _VMEM_BUDGET:
        sub -= 8
    return sub


def _pick_tile_lanes(s, c, in_item, max_tile):
    """Spatial lanes per block for the sublane-class path."""
    per_lane = 2 * c * in_item + 2 * 4 + 2 * 4 + 10 * c * 4
    cap = max(128, (_VMEM_BUDGET // per_lane) // 128 * 128)
    tile = max(128, (min(max_tile, cap) // 128) * 128)
    if s <= tile:
        return s          # single full-extent block (allowed even if not 128-multiple)
    return tile


def asl_focal_loss(inputs_nchw, target_nhw, *, gamma=2.0, eps=0.1,
                   reduction="mean", max_rows=128, max_tile_s=8192,
                   spatial_parallel=None):
    """ASL focal loss forward, matching ASL_FocalLoss(gamma, eps).forward.

    inputs_nchw: (N, C, H, W) float32/bfloat16 logits.
    target_nhw : (N, H, W) integer class ids.
    """
    if reduction not in ("mean", "sum"):
        # TODO(synk): reduction='none' (per-pixel output) and ignore_index
        # (boolean masking -> dynamic shapes) are not implemented.
        raise NotImplementedError(f"reduction={reduction!r} not supported")

    n, c, h, w = inputs_nchw.shape
    s = h * w
    gamma = float(gamma)
    eps = float(eps)
    in_item = inputs_nchw.dtype.itemsize
    tgt = target_nhw.astype(jnp.int32)

    if s % 128 == 0 and c <= _DENSE_CLASS_MAX:
        # Dense-vreg path.
        r = s // 128
        x4 = inputs_nchw.reshape(n, c, r, 128)               # free view of NCHW
        t4 = tgt.reshape(n, 1, r, 128)

        sub = _pick_sub_rows(r, c, in_item, max_rows)
        n_blocks = pl.cdiv(r, sub)
        if spatial_parallel is None:
            p_par = 2 if (n == 1 and n_blocks >= 2 and n_blocks % 2 == 0) else 1
        else:
            p_par = int(spatial_parallel)
            if p_par < 1 or n_blocks % p_par != 0:
                p_par = 1
        n_j = n_blocks // p_par
        has_tail = (n_blocks * sub) != r

        kernel = functools.partial(
            _asl_kernel_dense, gamma=gamma, eps=eps, num_classes=c,
            total_rows=r, sub=sub, n_j=n_j, has_tail=has_tail)

        partial_sums = pl.pallas_call(
            kernel,
            out_shape=jax.ShapeDtypeStruct((n, p_par, sub, 128), jnp.float32),
            grid_spec=pltpu.PrefetchScalarGridSpec(
                num_scalar_prefetch=0,
                grid=(n, p_par, n_j),
                in_specs=[
                    pl.BlockSpec((1, c, sub, 128),
                                 lambda i, p, j: (i, 0, p * n_j + j, 0)),
                    pl.BlockSpec((1, 1, sub, 128),
                                 lambda i, p, j: (i, 0, p * n_j + j, 0)),
                ],
                out_specs=pl.BlockSpec((1, 1, sub, 128),
                                       lambda i, p, j: (i, p, 0, 0)),
            ),
            compiler_params=pltpu.CompilerParams(
                dimension_semantics=("parallel", "parallel", "arbitrary"),
                vmem_limit_bytes=_VMEM_LIMIT),
        )(x4, t4)
    else:
        # Lanes path (large C, or H*W not a multiple of 128).
        # TODO(synk): no second spatial "parallel" axis here (v7x batch==1 case).
        x3 = inputs_nchw.reshape(n, c, s)                    # free view of NCHW
        t3 = tgt.reshape(n, 1, s)

        tile_s = _pick_tile_lanes(s, c, in_item, max_tile_s)
        grid_s = pl.cdiv(s, tile_s)
        has_tail = (s % tile_s) != 0

        kernel = functools.partial(
            _asl_kernel_lanes, gamma=gamma, eps=eps, num_classes=c,
            valid_s=s, tile_s=tile_s, has_tail=has_tail)

        partial_sums = pl.pallas_call(
            kernel,
            out_shape=jax.ShapeDtypeStruct((n, 1, tile_s), jnp.float32),
            grid_spec=pltpu.PrefetchScalarGridSpec(
                num_scalar_prefetch=0,
                grid=(n, grid_s),
                in_specs=[
                    pl.BlockSpec((1, c, tile_s), lambda i, j: (i, 0, j)),
                    pl.BlockSpec((1, 1, tile_s), lambda i, j: (i, 0, j)),
                ],
                out_specs=pl.BlockSpec((1, 1, tile_s), lambda i, j: (i, 0, 0)),
            ),
            compiler_params=pltpu.CompilerParams(
                dimension_semantics=("parallel", "arbitrary"),
                vmem_limit_bytes=_VMEM_LIMIT),
        )(x3, t3)

    total = jnp.sum(partial_sums)
    if reduction == "sum":
        return total
    return total / jnp.float32(n * s)


def _reference(inputs_nchw, target_nhw, gamma=2.0, eps=0.1):
    n, c, h, w = inputs_nchw.shape
    x = jnp.transpose(inputs_nchw, (0, 2, 3, 1)).reshape(-1, c).astype(jnp.float32)
    t = target_nhw.reshape(-1).astype(jnp.int32)
    log_preds = jax.nn.log_softmax(x, axis=-1)
    targets = jax.nn.one_hot(t, c, dtype=jnp.float32)
    anti = 1.0 - targets
    xs = jnp.exp(log_preds)
    xs_pos = xs * targets
    xs_neg = (1.0 - xs) * anti
    wgt = jnp.power(1.0 - xs_pos - xs_neg, gamma * targets + gamma * anti)
    lp = log_preds * wgt
    smoothed = targets * (1.0 - eps) + eps / c
    return jnp.mean(-jnp.sum(smoothed * lp, axis=-1))


if __name__ == "__main__":
    key = jax.random.PRNGKey(0)
    k = jax.random.split(key, 8)

    def check(inputs, target, tag, **kw):
        loss = asl_focal_loss(inputs, target, gamma=2.0, eps=0.1, **kw)
        jax.block_until_ready(loss)
        ref = _reference(inputs, target, gamma=2.0, eps=0.1)
        assert jnp.allclose(loss, ref, rtol=1e-5, atol=1e-5), (tag, loss, ref)

    # 1) Dense-vreg path, small NCHW shapes matching the module's forward contract.
    x1 = jax.random.normal(k[0], (2, 4, 16, 16), dtype=jnp.float32)
    t1 = jax.random.randint(k[1], (2, 16, 16), 0, 4, dtype=jnp.int32)
    check(x1, t1, "dense")

    # 2) Dense path with a masked row tail (H*W/128 = 11 rows, 8-row blocks).
    x2 = jax.random.normal(k[2], (2, 4, 44, 32), dtype=jnp.float32)
    t2 = jax.random.randint(k[3], (2, 44, 32), 0, 4, dtype=jnp.int32)
    check(x2, t2, "dense-tail")

    # 3) bf16 logits, batch=1: exercises the 2-way spatial "parallel" grid axis.
    x3 = jax.random.normal(k[4], (1, 4, 16, 128), dtype=jnp.bfloat16)
    t3 = jax.random.randint(k[5], (1, 16, 128), 0, 4, dtype=jnp.int32)
    check(x3, t3, "bf16-parallel", max_rows=8)

    # 4) H*W not a multiple of 128 -> lanes fallback path with a masked tail tile.
    x4 = jax.random.normal(k[6], (2, 4, 12, 30), dtype=jnp.float32)
    t4 = jax.random.randint(k[7], (2, 12, 30), 0, 4, dtype=jnp.int32)
    check(x4, t4, "lanes-tail", max_tile_s=256)

    print("KERNEL_OK")
</pallas_src>

<mosaic_0001>
module attributes {stable_mosaic.version = 11 : i64} {
  func.func @_asl_kernel_dense(%arg0: i32, %arg1: i32, %arg2: i32, %arg3: memref<1x4x2x128xf32, #tpu.memory_space<vmem>>, %arg4: memref<1x1x2x128xi32, #tpu.memory_space<vmem>>, %arg5: memref<1x1x2x128xf32, #tpu.memory_space<vmem>>) attributes {dimension_semantics = [#tpu.dimension_semantics<parallel>, #tpu.dimension_semantics<parallel>, #tpu.dimension_semantics<arbitrary>], iteration_bounds = array<i64: 2, 1, 1>, scalar_prefetch = 0 : i64, scratch_operands = 0 : i64, tpu.core_type = #tpu.core_type<tc>, window_params = [{transform_indices = @transform_0, window_bounds = array<i64: 1, 4, 2, 128>}, {transform_indices = @transform_1, window_bounds = array<i64: 1, 1, 2, 128>}, {transform_indices = @transform_2, window_bounds = array<i64: 1, 1, 2, 128>}]} {
    %c0_i32 = arith.constant 0 : i32
    %0 = arith.cmpi eq, %arg2, %c0_i32 : i32
    %1 = arith.extui %0 : i1 to i32
    %c0_i32_0 = arith.constant 0 : i32
    %2 = arith.cmpi ne, %1, %c0_i32_0 : i32
    scf.if %2 {
      %cst_37 = arith.constant 0.000000e+00 : f32
      %92 = vector.broadcast %cst_37 : f32 to vector<1x1x2x128xf32>
      %c0_38 = arith.constant 0 : index
      %c0_39 = arith.constant 0 : index
      %c0_40 = arith.constant 0 : index
      %c0_41 = arith.constant 0 : index
      %93 = vector.load %arg5[%c0_38, %c0_39, %c0_40, %c0_41] : memref<1x1x2x128xf32, #tpu.memory_space<vmem>>, vector<1x1x2x128xf32>
      tpu.vector_store %arg5[%c0_38, %c0_39, %c0_40, %c0_41], %92 {strides = array<i32>} : memref<1x1x2x128xf32, #tpu.memory_space<vmem>>, vector<1x1x2x128xf32>,
    } else {
    }
    %c0 = arith.constant 0 : index
    %c0_1 = arith.constant 0 : index
    %c0_2 = arith.constant 0 : index
    %c0_3 = arith.constant 0 : index
    %3 = vector.load %arg4[%c0, %c0_1, %c0_2, %c0_3] : memref<1x1x2x128xi32, #tpu.memory_space<vmem>>, vector<1x1x2x128xi32>
    %4 = vector.shape_cast %3 : vector<1x1x2x128xi32> to vector<2x128xi32>
    %c0_4 = arith.constant 0 : index
    %c0_5 = arith.constant 0 : index
    %c0_6 = arith.constant 0 : index
    %c0_7 = arith.constant 0 : index
    %5 = vector.load %arg3[%c0_4, %c0_5, %c0_6, %c0_7] : memref<1x4x2x128xf32, #tpu.memory_space<vmem>>, vector<1x1x2x128xf32>
    %6 = vector.shape_cast %5 : vector<1x1x2x128xf32> to vector<2x128xf32>
    %c0_8 = arith.constant 0 : index
    %c1 = arith.constant 1 : index
    %c0_9 = arith.constant 0 : index
    %c0_10 = arith.constant 0 : index
    %7 = vector.load %arg3[%c0_8, %c1, %c0_9, %c0_10] : memref<1x4x2x128xf32, #tpu.memory_space<vmem>>, vector<1x1x2x128xf32>
    %8 = vector.shape_cast %7 : vector<1x1x2x128xf32> to vector<2x128xf32>
    %c0_11 = arith.constant 0 : index
    %c2 = arith.constant 2 : index
    %c0_12 = arith.constant 0 : index
    %c0_13 = arith.constant 0 : index
    %9 = vector.load %arg3[%c0_11, %c2, %c0_12, %c0_13] : memref<1x4x2x128xf32, #tpu.memory_space<vmem>>, vector<1x1x2x128xf32>
    %10 = vector.shape_cast %9 : vector<1x1x2x128xf32> to vector<2x128xf32>
    %c0_14 = arith.constant 0 : index
    %c3 = arith.constant 3 : index
    %c0_15 = arith.constant 0 : index
    %c0_16 = arith.constant 0 : index
    %11 = vector.load %arg3[%c0_14, %c3, %c0_15, %c0_16] : memref<1x4x2x128xf32, #tpu.memory_space<vmem>>, vector<1x1x2x128xf32>
    %12 = vector.shape_cast %11 : vector<1x1x2x128xf32> to vector<2x128xf32>
    %13 = arith.maximumf %6, %8 : vector<2x128xf32>
    %14 = arith.maximumf %13, %10 : vector<2x128xf32>
    %15 = arith.maximumf %14, %12 : vector<2x128xf32>
    %16 = arith.subf %6, %15 : vector<2x128xf32>
    %17 = math.exp %16 : vector<2x128xf32>
    %18 = arith.subf %8, %15 : vector<2x128xf32>
    %19 = math.exp %18 : vector<2x128xf32>
    %20 = arith.subf %10, %15 : vector<2x128xf32>
    %21 = math.exp %20 : vector<2x128xf32>
    %22 = arith.subf %12, %15 : vector<2x128xf32>
    %23 = math.exp %22 : vector<2x128xf32>
    %24 = arith.addf %17, %19 : vector<2x128xf32>
    %25 = arith.addf %24, %21 : vector<2x128xf32>
    %26 = arith.addf %25, %23 : vector<2x128xf32>
    %27 = math.log %26 : vector<2x128xf32>
    %28 = arith.addf %15, %27 : vector<2x128xf32>
    %cst = arith.constant 1.000000e+00 : f32
    %29 = vector.broadcast %cst : f32 to vector<2x128xf32>
    %30 = arith.divf %29, %26 : vector<2x128xf32>
    %31 = arith.subf %6, %28 : vector<2x128xf32>
    %32 = arith.mulf %17, %30 : vector<2x128xf32>
    %c0_i32_17 = arith.constant 0 : i32
    %33 = vector.broadcast %c0_i32_17 : i32 to vector<2x128xi32>
    %34 = arith.cmpi eq, %4, %33 : vector<2x128xi32>
    %cst_18 = arith.constant 1.000000e+00 : f32
    %35 = vector.broadcast %cst_18 : f32 to vector<2x128xf32>
    %36 = arith.subf %35, %32 : vector<2x128xf32>
    %37 = arith.select %34, %36, %32 : vector<2x128xi1>, vector<2x128xf32>
    %38 = arith.mulf %37, %37 : vector<2x128xf32>
    %39 = arith.mulf %31, %38 : vector<2x128xf32>
    %cst_19 = arith.constant 0.000000e+00 : f32
    %40 = vector.broadcast %cst_19 : f32 to vector<2x128xf32>
    %41 = arith.select %34, %39, %40 : vector<2x128xi1>, vector<2x128xf32>
    %42 = arith.subf %8, %28 : vector<2x128xf32>
    %43 = arith.mulf %19, %30 : vector<2x128xf32>
    %c1_i32 = arith.constant 1 : i32
    %44 = vector.broadcast %c1_i32 : i32 to vector<2x128xi32>
    %45 = arith.cmpi eq, %4, %44 : vector<2x128xi32>
    %cst_20 = arith.constant 1.000000e+00 : f32
    %46 = vector.broadcast %cst_20 : f32 to vector<2x128xf32>
    %47 = arith.subf %46, %43 : vector<2x128xf32>
    %48 = arith.select %45, %47, %43 : vector<2x128xi1>, vector<2x128xf32>
    %49 = arith.mulf %48, %48 : vector<2x128xf32>
    %50 = arith.mulf %42, %49 : vector<2x128xf32>
    %51 = arith.addf %39, %50 : vector<2x128xf32>
    %cst_21 = arith.constant 0.000000e+00 : f32
    %52 = vector.broadcast %cst_21 : f32 to vector<2x128xf32>
    %53 = arith.select %45, %50, %52 : vector<2x128xi1>, vector<2x128xf32>
    %54 = arith.addf %41, %53 : vector<2x128xf32>
    %55 = arith.subf %10, %28 : vector<2x128xf32>
    %56 = arith.mulf %21, %30 : vector<2x128xf32>
    %c2_i32 = arith.constant 2 : i32
    %57 = vector.broadcast %c2_i32 : i32 to vector<2x128xi32>
    %58 = arith.cmpi eq, %4, %57 : vector<2x128xi32>
    %cst_22 = arith.constant 1.000000e+00 : f32
    %59 = vector.broadcast %cst_22 : f32 to vector<2x128xf32>
    %60 = arith.subf %59, %56 : vector<2x128xf32>
    %61 = arith.select %58, %60, %56 : vector<2x128xi1>, vector<2x128xf32>
    %62 = arith.mulf %61, %61 : vector<2x128xf32>
    %63 = arith.mulf %55, %62 : vector<2x128xf32>
    %64 = arith.addf %51, %63 : vector<2x128xf32>
    %cst_23 = arith.constant 0.000000e+00 : f32
    %65 = vector.broadcast %cst_23 : f32 to vector<2x128xf32>
    %66 = arith.select %58, %63, %65 : vector<2x128xi1>, vector<2x128xf32>
    %67 = arith.addf %54, %66 : vector<2x128xf32>
    %68 = arith.subf %12, %28 : vector<2x128xf32>
    %69 = arith.mulf %23, %30 : vector<2x128xf32>
    %c3_i32 = arith.constant 3 : i32
    %70 = vector.broadcast %c3_i32 : i32 to vector<2x128xi32>
    %71 = arith.cmpi eq, %4, %70 : vector<2x128xi32>
    %cst_24 = arith.constant 1.000000e+00 : f32
    %72 = vector.broadcast %cst_24 : f32 to vector<2x128xf32>
    %73 = arith.subf %72, %69 : vector<2x128xf32>
    %74 = arith.select %71, %73, %69 : vector<2x128xi1>, vector<2x128xf32>
    %75 = arith.mulf %74, %74 : vector<2x128xf32>
    %76 = arith.mulf %68, %75 : vector<2x128xf32>
    %77 = arith.addf %64, %76 : vector<2x128xf32>
    %cst_25 = arith.constant 0.000000e+00 : f32
    %78 = vector.broadcast %cst_25 : f32 to vector<2x128xf32>
    %79 = arith.select %71, %76, %78 : vector<2x128xi1>, vector<2x128xf32>
    %80 = arith.addf %67, %79 : vector<2x128xf32>
    %cst_26 = arith.constant 2.500000e-02 : f32
    %81 = vector.broadcast %cst_26 : f32 to vector<2x128xf32>
    %82 = arith.mulf %81, %77 : vector<2x128xf32>
    %cst_27 = arith.constant 0.899999976 : f32
    %83 = vector.broadcast %cst_27 : f32 to vector<2x128xf32>
    %84 = arith.mulf %83, %80 : vector<2x128xf32>
    %85 = arith.addf %82, %84 : vector<2x128xf32>
    %cst_28 = arith.constant 0.000000e+00 : f32
    %86 = vector.broadcast %cst_28 : f32 to vector<2x128xf32>
    %87 = arith.subf %86, %85 : vector<2x128xf32>
    %c0_29 = arith.constant 0 : index
    %c0_30 = arith.constant 0 : index
    %c0_31 = arith.constant 0 : index
    %c0_32 = arith.constant 0 : index
    %88 = vector.load %arg5[%c0_29, %c0_30, %c0_31, %c0_32] : memref<1x1x2x128xf32, #tpu.memory_space<vmem>>, vector<1x1x2x128xf32>
    %89 = vector.shape_cast %87 : vector<2x128xf32> to vector<1x1x2x128xf32>
    %90 = arith.addf %88, %89 : vector<1x1x2x128xf32>
    %c0_33 = arith.constant 0 : index
    %c0_34 = arith.constant 0 : index
    %c0_35 = arith.constant 0 : index
    %c0_36 = arith.constant 0 : index
    %91 = vector.load %arg5[%c0_33, %c0_34, %c0_35, %c0_36] : memref<1x1x2x128xf32, #tpu.memory_space<vmem>>, vector<1x1x2x128xf32>
    tpu.vector_store %arg5[%c0_33, %c0_34, %c0_35, %c0_36], %90 {strides = array<i32>} : memref<1x1x2x128xf32, #tpu.memory_space<vmem>>, vector<1x1x2x128xf32>,
    return
  }
  func.func @transform_0(%arg0: i32, %arg1: i32, %arg2: i32) -> (i32, i32, i32, i32) {
    %c1_i32 = arith.constant 1 : i32
    %0 = arith.muli %arg1, %c1_i32 : i32
    %1 = arith.addi %0, %arg2 : i32
    %c0_i32 = arith.constant 0 : i32
    %c0_i32_0 = arith.constant 0 : i32
    %c0_i32_1 = arith.constant 0 : i32
    return %arg0, %c0_i32, %1, %c0_i32_0 : i32, i32, i32, i32
  }
  func.func @transform_1(%arg0: i32, %arg1: i32, %arg2: i32) -> (i32, i32, i32, i32) {
    %c1_i32 = arith.constant 1 : i32
    %0 = arith.muli %arg1, %c1_i32 : i32
    %1 = arith.addi %0, %arg2 : i32
    %c0_i32 = arith.constant 0 : i32
    %c0_i32_0 = arith.constant 0 : i32
    %c0_i32_1 = arith.constant 0 : i32
    return %arg0, %c0_i32, %1, %c0_i32_0 : i32, i32, i32, i32
  }
  func.func @transform_2(%arg0: i32, %arg1: i32, %arg2: i32) -> (i32, i32, i32, i32) {
    %c0_i32 = arith.constant 0 : i32
    %c0_i32_0 = arith.constant 0 : i32
    %c0_i32_1 = arith.constant 0 : i32
    return %arg0, %arg1, %c0_i32, %c0_i32_0 : i32, i32, i32, i32
  }
}

</mosaic_0001>

<llo_original>
// kernel: tpu_custom_call.1
$region0: #{tpu_custom_call.1}
  #allocation0 [shape = 'u32[]', space=smem, size = 0x4, offset = 0x4, fixed_abs, tag = 'smem constant byte address 0x4 - core index']
  #allocation1 [shape = 'u32[144,128]{1,0:T(1,128)}', space=vmem, size = 0x12000, scoped, tag = 'internal scratch']
  %s0 = inlined_call_operand.hbm [shape: f32[2,4,2,128], index: 0, kind: input, shape index: {}]
  %s1 = inlined_call_operand.hbm [shape: s32[2,1,2,128], index: 1, kind: input, shape index: {}]
  %s2 = inlined_call_operand.hbm [shape: f32[2,1,2,128], index: 2, kind: output, shape index: {}]
  %s3 = sld [smem:[#allocation0]]
  $region53: #{tpu_custom_call.1} parent=0
    _
  %s5 = ssub.s32 1, %s3
  %s6 = scalar_select 0, %s5, %s3
  $region1: #{tpu_custom_call.1} parent=0
    #allocation2 [shape = 'u8[8192]{0}', space=vmem, size = 0x2000, scoped, tag = 'input window, operand 0']
    #allocation3 [shape = 's32[2]{0}', space=sflag, size = 0x8, scoped, tag = 'scoped memory for tpu_custom_call.1']
    #allocation4 [shape = 's32[2]{0}', space=sflag, size = 0x8, scoped, tag = 'scoped memory for tpu_custom_call.1']
    #allocation5 [shape = 'u8[2048]{0}', space=vmem, size = 0x800, scoped, tag = 'input window, operand 1']
    #allocation6 [shape = 's32[2]{0}', space=sflag, size = 0x8, scoped, tag = 'scoped memory for tpu_custom_call.1']
    #allocation7 [shape = 'u8[2048]{0}', space=vmem, size = 0x800, scoped, tag = 'output window, operand 0']
    %7 = vsyncpa [#allocation3], 0
    %s8 = scalar_lea.sflag [#allocation3], 1
    %9 = vsyncpa %s8, 0
    %10 = vsyncpa [#allocation6], 0
    %s11 = scalar_lea.sflag [#allocation6], 1
    %12 = vsyncpa %s11, 0
    %13 = vsyncpa [#allocation4], 0
    %s14 = scalar_lea.sflag [#allocation4], 1
    %15 = vsyncpa %s14, 0
    loop: start=0, step=1, limit=4
    $region2: #{tpu_custom_call.1} parent=1 // loop_pre_header
      _
    $region3: #{tpu_custom_call.1} parent=1 // loop_header
      %s17 = sphi 0, %s21
      %p18 = scmp.ge.s32.totalorder %s17, 4
      %s24 = sphi 0, %s43
      %s25 = sphi 0, %s39
      %s26 = sphi 0, %s35
      %s27 = sphi 0, %s24
      %s28 = sphi 0, %s25
      %s29 = sphi 0, %s26
      %s30 = sphi 0, %s27
      %s31 = sphi 0, %s28
      %s32 = sphi 0, %s29
      %s50 = sphi 0, %s52
      %s53 = sphi 0, %s50
      %s54 = sphi 0, %s53
      %s70 = sphi 0, %s54
      %s80 = sphi 0, %s82
      %s83 = sphi 0, %s80
      %s84 = sphi 0, %s83
      %s100 = sphi 0, %s84
      %s108 = sphi 0, %s110
      %s111 = sphi 0, %s108
      %s112 = sphi 0, %s111
      %s128 = sphi 0, %s112
    $region4: #{tpu_custom_call.1} parent=1 // loop_header_branch
      %20 = sbr.rel (%p18) target = $region8
    $region5: #{tpu_custom_call.1} parent=1 // loop_body
      %s22 = ssub.s32 %s17, 1
      %s23 = ssub.s32 %s17, 2
      %s33 = sadd.s32 1, %s26
      %p34 = scmp.ge.s32.totalorder %s33, 1
      %s35 = scalar_select %p34, 0, %s33
      %s36 = sadd.s32 1, %s25
      %s37 = scalar_select %p34, %s36, %s25
      %p38 = scmp.ge.s32.totalorder %s37, 1
      %s39 = scalar_select %p38, 0, %s37
      %s40 = sadd.s32 1, %s24
      %s41 = scalar_select %p38, %s40, %s24
      %p42 = scmp.ge.s32.totalorder %s41, 2
      %s43 = scalar_select %p42, 0, %s41
      %s44 = sadd.s32 %s25, %s26
      %s45 = sadd.s32 %s39, %s35
      %s46 = ssub.s32 %s24, %s43
      %s47 = ssub.s32 %s44, %s45
      %s48 = sor.u32 %s46, %s47
      %p49 = scmp.eq.s32.totalorder %s48, 0
      %s51 = sadd.s32 %s50, 1
      %s52 = scalar_select %p49, %s50, %s51
      %p55 = pneg %p49
      %p56 = scmp.eq.s32.totalorder %s17, 1
      %p57 = por %p55, %p56
      %p58 = scmp.ne.s32.totalorder %s50, %s53
      %p59 = scmp.eq.s32.totalorder %s17, 0
      %p60 = por %p58, %p59
      %p61 = scmp.ne.s32.totalorder %s50, %s53
      %p62 = scmp.eq.s32.totalorder %s22, 1
      %p63 = por %p61, %p62
      %p64 = scmp.ne.s32.totalorder %s53, %s54
      %p65 = scmp.eq.s32.totalorder %s22, 0
      %p66 = por %p64, %p65
      %p67 = scmp.ne.s32.totalorder %s53, %s54
      %p68 = scmp.eq.s32.totalorder %s23, 1
      %p69 = por %p67, %p68
      %p71 = scmp.ne.s32.totalorder %s54, %s70
      %p72 = scmp.eq.s32.totalorder %s23, 0
      %p73 = por %p71, %p72
      %s74 = sadd.s32 %s25, %s26
      %s75 = sadd.s32 %s39, %s35
      %s76 = ssub.s32 %s24, %s43
      %s77 = ssub.s32 %s74, %s75
      %s78 = sor.u32 %s76, %s77
      %p79 = scmp.eq.s32.totalorder %s78, 0
      %s81 = sadd.s32 %s80, 1
      %s82 = scalar_select %p79, %s80, %s81
      %p85 = pneg %p79
      %p86 = scmp.eq.s32.totalorder %s17, 1
      %p87 = por %p85, %p86
      %p88 = scmp.ne.s32.totalorder %s80, %s83
      %p89 = scmp.eq.s32.totalorder %s17, 0
      %p90 = por %p88, %p89
      %p91 = scmp.ne.s32.totalorder %s80, %s83
      %p92 = scmp.eq.s32.totalorder %s22, 1
      %p93 = por %p91, %p92
      %p94 = scmp.ne.s32.totalorder %s83, %s84
      %p95 = scmp.eq.s32.totalorder %s22, 0
      %p96 = por %p94, %p95
      %p97 = scmp.ne.s32.totalorder %s83, %s84
      %p98 = scmp.eq.s32.totalorder %s23, 1
      %p99 = por %p97, %p98
      %p101 = scmp.ne.s32.totalorder %s84, %s100
      %p102 = scmp.eq.s32.totalorder %s23, 0
      %p103 = por %p101, %p102
      %s104 = ssub.s32 %s24, %s43
      %s105 = ssub.s32 %s25, %s39
      %s106 = sor.u32 %s104, %s105
      %p107 = scmp.eq.s32.totalorder %s106, 0
      %s109 = sadd.s32 %s108, 1
      %s110 = scalar_select %p107, %s108, %s109
      %p113 = pneg %p107
      %p114 = scmp.eq.s32.totalorder %s17, 1
      %p115 = por %p113, %p114
      %p116 = scmp.ne.s32.totalorder %s108, %s111
      %p117 = scmp.eq.s32.totalorder %s17, 0
      %p118 = por %p116, %p117
      %p119 = scmp.ne.s32.totalorder %s108, %s111
      %p120 = scmp.eq.s32.totalorder %s22, 1
      %p121 = por %p119, %p120
      %p122 = scmp.ne.s32.totalorder %s111, %s112
      %p123 = scmp.eq.s32.totalorder %s22, 0
      %p124 = por %p122, %p123
      %p125 = scmp.ne.s32.totalorder %s111, %s112
      %p126 = scmp.eq.s32.totalorder %s23, 1
      %p127 = por %p125, %p126
      %p129 = scmp.ne.s32.totalorder %s112, %s128
      %p130 = scmp.eq.s32.totalorder %s23, 0
      %p131 = por %p129, %p130
      %p132 = scmp.le.s32.totalorder 1, %s17
      %p133 = scmp.lt.s32.totalorder %s17, 3
      %p134 = pnand %p132, %p133
      %p135 = pneg %p134
      // Predicated region
      $region9: #{tpu_custom_call.1} parent=5 // pred_check
        _
      $region10: #{tpu_custom_call.1} parent=5 // pred_check_branch
        %137 = sbr.rel (%p134) target = $region12
      $region11: #{tpu_custom_call.1} parent=5 // pred_region
        %s138 = ssub.s32 %s17, 1
      $region12: #{tpu_custom_call.1} parent=5 // pred_fallthru
        _
      %p139 = scmp.lt.s32.totalorder %s17, 2
      // Predicated region
      $region13: #{tpu_custom_call.1} parent=5 // pred_check
        %p140 = pneg %p139
      $region14: #{tpu_custom_call.1} parent=5 // pred_check_branch
        %142 = sbr.rel (%p140) target = $region16
      $region15: #{tpu_custom_call.1} parent=5 // pred_region
        // Predicated region
        $region17: #{tpu_custom_call.1} parent=15 // pred_check
          %p143 = pneg %p60
        $region18: #{tpu_custom_call.1} parent=15 // pred_check_branch
          %145 = sbr.rel (%p143) target = $region20
        $region19: #{tpu_custom_call.1} parent=15 // pred_region
          %s146 = sand.u32 %s50, 1
          %s147 = scalar_lea.sflag [#allocation3], %s146
          %s148 = sand.u32 %s50, 1
          %s149 = smul.addr %s148, 8
          %s150 = scalar_lea.vmem [#allocation2], %s149
          %s151 = sadd.s32 %s25, %s26
          %s153 = ssub.s32 128, 128
          %154 = vsyncadd %s147, %s153
          %s155 = smul.addr %s24, 4
          %s156 = sadd.s32 %s151, %s155
          %s157 = smul.addr %s156, 32
          %s158 = scalar_lea.hbm %s0, %s157
          %s159 = sshll.u32 %s150, 4
          %s160 = int_to_ptr.vmem [resolvable:$true] %s159
          %165 = dma.hbm_to_vmem [thread:$0]  %s158, 128, %s160, %s147, 32, 32, 2
        $region20: #{tpu_custom_call.1} parent=15 // pred_fallthru
          _
        // Predicated region
        $region21: #{tpu_custom_call.1} parent=15 // pred_check
          %p166 = pneg %p90
        $region22: #{tpu_custom_call.1} parent=15 // pred_check_branch
          %168 = sbr.rel (%p166) target = $region24
        $region23: #{tpu_custom_call.1} parent=15 // pred_region
          %s169 = sand.u32 %s80, 1
          %s170 = scalar_lea.sflag [#allocation6], %s169
          %s171 = sand.u32 %s80, 1
          %s172 = smul.addr %s171, 2
          %s173 = scalar_lea.vmem [#allocation5], %s172
          %s174 = sadd.s32 %s25, %s26
          %s176 = ssub.s32 32, 32
          %177 = vsyncadd %s170, %s176
          %s178 = sadd.s32 %s174, %s24
          %s179 = smul.addr %s178, 32
          %s180 = scalar_lea.hbm %s1, %s179
          %s182 = sshll.u32 %s173, 4
          %s183 = int_to_ptr.vmem [resolvable:$true] %s182
          %185 = dma.hbm_to_vmem [thread:$0]  %s180, 32, %s183, %s170
        $region24: #{tpu_custom_call.1} parent=15 // pred_fallthru
          _
      $region16: #{tpu_custom_call.1} parent=5 // pred_fallthru
        _
      %p186 = scmp.le.s32.totalorder 1, %s17
      %p187 = scmp.lt.s32.totalorder %s17, 3
      %p188 = pnand %p186, %p187
      %p189 = pneg %p188
      // Predicated region
      $region25: #{tpu_custom_call.1} parent=5 // pred_check
        _
      $region26: #{tpu_custom_call.1} parent=5 // pred_check_branch
        %191 = sbr.rel (%p188) target = $region28
      $region27: #{tpu_custom_call.1} parent=5 // pred_region
        %s192 = ssub.s32 %s17, 1
        %s193 = sand.u32 %s53, 1
        %s194 = scalar_lea.sflag [#allocation3], %s193
        %s195 = sand.u32 %s53, 1
        %s196 = smul.addr %s195, 8
        %s197 = scalar_lea.vmem [#allocation2], %s196
        // Predicated region
        $region29: #{tpu_custom_call.1} parent=27 // pred_check
          %p198 = pneg %p66
        $region30: #{tpu_custom_call.1} parent=27 // pred_check_branch
          %200 = sbr.rel (%p198) target = $region32
        $region31: #{tpu_custom_call.1} parent=27 // pred_region
          %201 = dma.done %s194, 128
        $region32: #{tpu_custom_call.1} parent=27 // pred_fallthru
          _
        %s202 = sand.u32 %s83, 1
        %s203 = scalar_lea.sflag [#allocation6], %s202
        %s204 = sand.u32 %s83, 1
        %s205 = smul.addr %s204, 2
        %s206 = scalar_lea.vmem [#allocation5], %s205
        // Predicated region
        $region33: #{tpu_custom_call.1} parent=27 // pred_check
          %p207 = pneg %p96
        $region34: #{tpu_custom_call.1} parent=27 // pred_check_branch
          %209 = sbr.rel (%p207) target = $region36
        $region35: #{tpu_custom_call.1} parent=27 // pred_region
          %210 = dma.done %s203, 32
        $region36: #{tpu_custom_call.1} parent=27 // pred_fallthru
          _
        %s211 = sand.u32 %s53, 1
        %s212 = scalar_lea.sflag [#allocation3], %s211
        %s213 = sand.u32 %s53, 1
        %s214 = smul.addr %s213, 8
        %s215 = scalar_lea.vmem [#allocation2], %s214
        %p216 = pneg %p66
        %p217 = pneg %p63
        %s218 = sand.u32 %s83, 1
        %s219 = scalar_lea.sflag [#allocation6], %s218
        %s220 = sand.u32 %s83, 1
        %s221 = smul.addr %s220, 2
        %s222 = scalar_lea.vmem [#allocation5], %s221
        %p223 = pneg %p96
        %p224 = pneg %p93
        %p225 = pneg %p124
        %p226 = pneg %p121
        %s227 = sand.u32 %s111, 1
        %s228 = scalar_lea.sflag [#allocation4], %s227
        %s229 = sand.u32 %s111, 1
        %s230 = smul.addr %s229, 2
        %s231 = scalar_lea.vmem [#allocation7], %s230
        %s232 = sadd.s32 %s28, %s29
        %s233 = sadd.s32 %s28, %s29
        %p234 = scmp.eq.s32.totalorder %s29, 0
        // Predicated region
        $region37: #{tpu_custom_call.1} parent=27 // pred_check
          %p235 = pneg %p234
        $region38: #{tpu_custom_call.1} parent=27 // pred_check_branch
          %237 = sbr.rel (%p235) target = $region40
        $region39: #{tpu_custom_call.1} parent=27 // pred_region
          %238 = vst [vmem:[%s231] sm:$0x3] 0.0
        $region40: #{tpu_custom_call.1} parent=27 // pred_fallthru
          _
        %v239 = vld [vmem:[%s206] sm:$0x3]
        %v240 = vld [vmem:[%s197] sm:$0x3]
        %s241 = scalar_lea.vmem %s197, 2 [#allocation2]
        %v242 = vld [vmem:[%s241] sm:$0x3]
        %s243 = scalar_lea.vmem %s197, 4 [#allocation2]
        %v244 = vld [vmem:[%s243] sm:$0x3]
        %s245 = scalar_lea.vmem %s197, 6 [#allocation2]
        %v246 = vld [vmem:[%s245] sm:$0x3]
        %v247 = vmax.f32 %v240, %v242
        %v248 = vmax.f32 %v247, %v244
        %v249 = vmax.f32 %v248, %v246
        %v250 = vsub.f32 %v240, %v249
        %v251 = vmul.f32 %v250, 1.442695
        %v252 = vpow.pop %v251
        %v253 = vsub.f32 %v242, %v249
        %v254 = vmul.f32 %v253, 1.442695
        %v255 = vpow.pop %v254
        %v256 = vsub.f32 %v244, %v249
        %v257 = vmul.f32 %v256, 1.442695
        %v258 = vpow.pop %v257
        %v259 = vsub.f32 %v246, %v249
        %v260 = vmul.f32 %v259, 1.442695
        %v261 = vpow.pop %v260
        %v262 = vadd.f32 %v252, %v255
        %v263 = vadd.f32 %v262, %v258
        %v264 = vadd.f32 %v263, %v261
        %v265 = vlog2.pop %v264
        %v266 = vmul.f32 %v265, 0.6931472
        %v267 = vadd.f32 %v249, %v266
        %v268 = vrcp.pop %v264
        %v269 = vmul.f32 1.0, %v268
        %v270 = vsub.f32 %v240, %v267
        %v271 = vmul.f32 %v252, %v269
        %vm272 = vcmp.eq.s32.totalorder %v239, 0
        %v273 = vsub.f32 1.0, %v271
        %v274 = vsel %vm272, %v273, %v271
        %v275 = vmul.f32 %v274, %v274
        %v276 = vmul.f32 %v270, %v275
        %v277 = vsel %vm272, %v276, 0.0
        %v278 = vsub.f32 %v242, %v267
        %v279 = vmul.f32 %v255, %v269
        %vm280 = vcmp.eq.s32.totalorder %v239, 1
        %v281 = vsub.f32 1.0, %v279
        %v282 = vsel %vm280, %v281, %v279
        %v283 = vmul.f32 %v282, %v282
        %v284 = vmul.f32 %v278, %v283
        %v285 = vadd.f32 %v276, %v284
        %v286 = vsel %vm280, %v284, 0.0
        %v287 = vadd.f32 %v277, %v286
        %v288 = vsub.f32 %v244, %v267
        %v289 = vmul.f32 %v258, %v269
        %vm290 = vcmp.eq.s32.totalorder %v239, 2
        %v291 = vsub.f32 1.0, %v289
        %v292 = vsel %vm290, %v291, %v289
        %v293 = vmul.f32 %v292, %v292
        %v294 = vmul.f32 %v288, %v293
        %v295 = vadd.f32 %v285, %v294
        %v296 = vsel %vm290, %v294, 0.0
        %v297 = vadd.f32 %v287, %v296
        %v298 = vsub.f32 %v246, %v267
        %v299 = vmul.f32 %v261, %v269
        %vm300 = vcmp.eq.s32.totalorder %v239, 3
        %v301 = vsub.f32 1.0, %v299
        %v302 = vsel %vm300, %v301, %v299
        %v303 = vmul.f32 %v302, %v302
        %v304 = vmul.f32 %v298, %v303
        %v305 = vadd.f32 %v295, %v304
        %v306 = vsel %vm300, %v304, 0.0
        %v307 = vadd.f32 %v297, %v306
        %v308 = vmul.f32 %v305, 0.025
        %v309 = vmul.f32 %v307, 0.9
        %v310 = vadd.f32 %v308, %v309
        %v311 = vsub.f32 0.0, %v310
        %v312 = vld [vmem:[%s231] sm:$0x3]
        %v313 = vadd.f32 %v312, %v311
        %314 = vst [vmem:[%s231] sm:$0x3] %v313
        %s315 = sand.u32 %s111, 1
        %s316 = scalar_lea.sflag [#allocation4], %s315
        %s317 = sand.u32 %s111, 1
        %s318 = smul.addr %s317, 2
        %s319 = scalar_lea.vmem [#allocation7], %s318
        // Predicated region
        $region41: #{tpu_custom_call.1} parent=27 // pred_check
          %p320 = pneg %p121
        $region42: #{tpu_custom_call.1} parent=27 // pred_check_branch
          %322 = sbr.rel (%p320) target = $region44
        $region43: #{tpu_custom_call.1} parent=27 // pred_region
          %s324 = ssub.s32 32, 32
          %325 = vsyncadd %s316, %s324
          %s326 = sadd.s32 %s28, %s27
          %s327 = smul.addr %s326, 32
          %s328 = scalar_lea.hbm %s2, %s327
          %s330 = sshll.u32 %s319, 4
          %s331 = int_to_ptr.vmem [resolvable:$true] %s330
          %333 = dma.vmem_to_hbm [thread:$0]  %s331, 32, %s328, %s316
        $region44: #{tpu_custom_call.1} parent=27 // pred_fallthru
          _
      $region28: #{tpu_custom_call.1} parent=5 // pred_fallthru
        _
      %p334 = scmp.le.s32.totalorder 2, %s17
      // Predicated region
      $region45: #{tpu_custom_call.1} parent=5 // pred_check
        %p335 = pneg %p334
      $region46: #{tpu_custom_call.1} parent=5 // pred_check_branch
        %337 = sbr.rel (%p335) target = $region48
      $region47: #{tpu_custom_call.1} parent=5 // pred_region
        %s338 = ssub.s32 %s17, 2
        // Predicated region
        $region49: #{tpu_custom_call.1} parent=47 // pred_check
          %p339 = pneg %p127
        $region50: #{tpu_custom_call.1} parent=47 // pred_check_branch
          %341 = sbr.rel (%p339) target = $region52
        $region51: #{tpu_custom_call.1} parent=47 // pred_region
          %s342 = sand.u32 %s112, 1
          %s343 = scalar_lea.sflag [#allocation4], %s342
          %s344 = sand.u32 %s112, 1
          %s345 = smul.addr %s344, 2
          %s346 = scalar_lea.vmem [#allocation7], %s345
          %347 = dma.done %s343, 32
        $region52: #{tpu_custom_call.1} parent=47 // pred_fallthru
          _
      $region48: #{tpu_custom_call.1} parent=5 // pred_fallthru
        _
    $region6: #{tpu_custom_call.1} parent=1 // loop_footer
      %s21 = sadd.s32 1, %s17
    $region7: #{tpu_custom_call.1} parent=1 // loop_footer_branch
      %16 = sbr.rel target = $region3
    $region8: #{tpu_custom_call.1} parent=1 // loop_exit
      _
    %348 = vsyncpa [#allocation3], 1
    %s349 = scalar_lea.sflag [#allocation3], 1
    %350 = vsyncpa %s349, 1
    %351 = vsyncpa [#allocation6], 1
    %s352 = scalar_lea.sflag [#allocation6], 1
    %353 = vsyncpa %s352, 1
    %354 = vsyncpa [#allocation4], 1
    %s355 = scalar_lea.sflag [#allocation4], 1
    %356 = vsyncpa %s355, 1

</llo_original>
